<compile_context>
chip_gen: v6e
topology: v6e:2x2x1
jax: 0.10.0
libtpu: 0.0.40
codegen_flags: <defaults>
</compile_context>

<pallas_src>
import functools

import numpy as np
import jax
import jax.numpy as jnp
from jax import lax
from jax.experimental import pallas as pl
from jax.experimental.pallas import tpu as pltpu


# ----------------------------------------------------------------------------
# Kernel
# ----------------------------------------------------------------------------
def _mlp_kernel(x_ref, g_ref, be_ref,
                w1_ref, b1_ref, w2_ref, b2_ref, w3_ref, b3_ref,
                o_ref, *, eps, mxu_dtype):
    # ---- LayerNorm over the feature axis (stats in f32, single pass) ----
    x = x_ref[...].astype(jnp.float32)
    inv_d = 1.0 / x.shape[-1]
    mean = jnp.sum(x, axis=-1, keepdims=True) * inv_d
    mean_sq = jnp.sum(x * x, axis=-1, keepdims=True) * inv_d
    # E[x^2] - mean^2 can go slightly negative from cancellation; clamp.
    var = jnp.maximum(mean_sq - mean * mean, 0.0)
    xn = (x - mean) * lax.rsqrt(var + eps)
    xn = xn * g_ref[...].astype(jnp.float32) + be_ref[...].astype(jnp.float32)

    def linear(a, w_ref, b_ref):
        # MXU operands in the weights' native dtype, or in an explicitly
        # requested dtype (e.g. bf16 to avoid f32 multi-pass emulation);
        # accumulation is always f32.
        op_dtype = w_ref.dtype if mxu_dtype is None else mxu_dtype
        acc = jnp.dot(a.astype(op_dtype), w_ref[...].astype(op_dtype),
                      preferred_element_type=jnp.float32)
        return acc + b_ref[...].astype(jnp.float32)

    h1 = linear(xn, w1_ref, b1_ref)    # linear1 (+ dropout1 == identity, eval)
    h2 = linear(h1, w2_ref, b2_ref)    # linear2 (+ dropout2 == identity, eval)
    out = linear(h2, w3_ref, b3_ref)   # linear3 (lane-padded output)
    o_ref[...] = out.astype(o_ref.dtype)


# ----------------------------------------------------------------------------
# Helpers
# ----------------------------------------------------------------------------
def _cdiv(a, b):
    return -(-a // b)


def _round_up(n, m):
    return ((n + m - 1) // m) * m


def _choose_block_m(batch, mult=8):
    """Row-tile size: as large as possible (<=256, multiple of `mult`) while
    keeping >=4 grid steps (2 per v7x TensorCore) and small row padding."""
    if batch <= mult:
        return mult
    max_bm = 256
    min_steps = max(4, _cdiv(batch, max_bm))
    best_bm, best_padded = None, None
    # Small search over step counts near the minimum; prefer fewer, fatter
    # tiles when padding ties.
    for steps in range(min_steps, min_steps + 9):
        bm = min(max_bm, _round_up(_cdiv(batch, steps), mult))
        padded = _round_up(batch, bm)
        if (best_bm is None or padded < best_padded
                or (padded == best_padded and bm > best_bm)):
            best_bm, best_padded = bm, padded
    return best_bm


def _physical_vmem_bytes():
    """Generation-aware physical VMEM (v5e/v6e: 128 MiB, v7x: 64 MiB)."""
    try:
        info = pltpu.get_tpu_info()
        for attr in ("vmem_capacity_bytes", "vmem_bytes", "vmem_size_bytes"):
            v = getattr(info, attr, None)
            if v:
                return int(v)
    except Exception:
        pass
    return 64 << 20  # conservative default: assume v7x


def _vmem_limit_bytes(block_m, d_in, d_h, d_out_p, x_itemsize, w_itemsize,
                      weight_buffers):
    weight_elems = (d_in * d_h + d_h * d_h + d_h * d_out_p
                    + 2 * d_in + 2 * d_h + d_out_p)
    weight_bytes = weight_elems * w_itemsize * weight_buffers
    io_bytes = 2 * block_m * (d_in + d_out_p) * x_itemsize  # double-buffered tiles
    scratch_bytes = block_m * (d_in + 2 * d_h + d_out_p) * 4  # f32 intermediates
    est = weight_bytes + io_bytes + scratch_bytes + (4 << 20)
    # Cap at 3/4 of physical VMEM: 48 MiB on v7x, ~96 MiB on v5e/v6e.
    cap = (_physical_vmem_bytes() * 3) // 4
    return int(min(max(est, 16 << 20), cap))


# Grid-invariant operands are fetched exactly once; single-buffering them
# (pl.Buffered(1)) halves their VMEM footprint.  Probe once whether this JAX /
# Mosaic build accepts it; fall back to default double-buffering otherwise.
_SINGLE_BUFFER_OK = None


def _single_buffer_weights_supported():
    global _SINGLE_BUFFER_OK
    if _SINGLE_BUFFER_OK is not None:
        return _SINGLE_BUFFER_OK
    try:
        spec = pl.BlockSpec((8, 128), lambda i: (0, 0),
                            pipeline_mode=pl.Buffered(1))

        def _probe(a_ref, o_ref):
            o_ref[...] = a_ref[...] + 1.0

        out = pl.pallas_call(
            _probe,
            out_shape=jax.ShapeDtypeStruct((16, 128), jnp.float32),
            grid=(2,),
            in_specs=[spec],
            out_specs=pl.BlockSpec((8, 128), lambda i: (i, 0)),
        )(jnp.zeros((8, 128), jnp.float32))
        jax.block_until_ready(out)
        _SINGLE_BUFFER_OK = bool(np.allclose(np.asarray(out), 1.0))
    except Exception:
        _SINGLE_BUFFER_OK = False
    return _SINGLE_BUFFER_OK


# ----------------------------------------------------------------------------
# Wrapper
# ----------------------------------------------------------------------------
def mlp_forward(x, params, *, eps, block_m=None, mxu_dtype=None):
    """x: (B, input_size) -> (B, output_size).

    Run this under jax.jit (the demo does) so the batch / lane padding below
    folds into the compiled graph instead of extra eager HBM round trips.
    """
    gamma, beta, w1, b1, w2, b2, w3, b3 = params
    B, D_in = x.shape
    D_h = w1.shape[1]
    D_out = w3.shape[1]

    # Lane-dense output: pad the final projection to a multiple of 128 lanes
    # so stores are unmasked vst; slice the padding off afterwards.
    D_out_p = max(_round_up(D_out, 128), 128)
    if D_out_p != D_out:
        w3 = jnp.pad(w3, ((0, 0), (0, D_out_p - D_out)))
        b3 = jnp.pad(b3, ((0, 0), (0, D_out_p - D_out)))

    # Row tiling: fill the MXU with fat tiles while keeping >=4 grid steps and
    # low padding.  Sublane multiple depends on dtype packing.
    itemsize = jnp.dtype(x.dtype).itemsize
    sub_mult = {4: 8, 2: 16, 1: 32}.get(itemsize, 8)
    if block_m is None:
        block_m = _choose_block_m(B, sub_mult)
    B_p = _round_up(B, block_m)
    if B_p != B:
        x = jnp.pad(x, ((0, B_p - B), (0, 0)))

    grid = (B_p // block_m,)

    # Weights / LN params: grid-invariant index_map, fully resident in VMEM;
    # single-buffer them when supported.
    single_buf = _single_buffer_weights_supported()

    def invariant(shape):
        idx = lambda i: (0,) * len(shape)
        if single_buf:
            return pl.BlockSpec(shape, idx, pipeline_mode=pl.Buffered(1))
        return pl.BlockSpec(shape, idx)

    kernel = functools.partial(_mlp_kernel, eps=eps, mxu_dtype=mxu_dtype)

    w_bytes = jnp.dtype(w1.dtype).itemsize
    flops = 2 * B_p * (D_in * D_h + D_h * D_h + D_h * D_out_p) + 8 * B_p * D_in
    bytes_accessed = (
        B_p * D_in * itemsize
        + (D_in * D_h + D_h * D_h + D_h * D_out_p
           + 2 * D_in + 2 * D_h + D_out_p) * w_bytes
        + B_p * D_out_p * itemsize)

    out_padded = pl.pallas_call(
        kernel,
        out_shape=jax.ShapeDtypeStruct((B_p, D_out_p), x.dtype),
        grid=grid,
        in_specs=[
            pl.BlockSpec((block_m, D_in), lambda i: (i, 0)),   # x rows
            invariant((1, D_in)),                              # ln gamma
            invariant((1, D_in)),                              # ln beta
            invariant((D_in, D_h)),                            # w1
            invariant((1, D_h)),                               # b1
            invariant((D_h, D_h)),                             # w2
            invariant((1, D_h)),                               # b2
            invariant((D_h, D_out_p)),                         # w3 (lane-padded)
            invariant((1, D_out_p)),                           # b3 (lane-padded)
        ],
        out_specs=pl.BlockSpec((block_m, D_out_p), lambda i: (i, 0)),
        compiler_params=pltpu.CompilerParams(
            dimension_semantics=("parallel",),
            vmem_limit_bytes=_vmem_limit_bytes(
                block_m, D_in, D_h, D_out_p, itemsize, w_bytes,
                weight_buffers=1 if single_buf else 2)),
        cost_estimate=pl.CostEstimate(
            flops=int(flops),
            transcendentals=int(B_p),
            bytes_accessed=int(bytes_accessed)),
    )(x, gamma, beta, w1, b1, w2, b2, w3, b3)

    return out_padded[:B, :D_out]


# ----------------------------------------------------------------------------
# Params & reference
# ----------------------------------------------------------------------------
def init_params(key, input_size, hidden_size, output_size, dtype=jnp.float32):
    """Deterministic parameter init mirroring the PyTorch module's shapes."""
    ks = jax.random.split(key, 6)

    def linear_init(kw, kb, fan_in, fan_out):
        bound = 1.0 / float(np.sqrt(fan_in))
        # stored as (in, out) so the kernel can do x @ W
        w = jax.random.uniform(kw, (fan_in, fan_out), dtype, -bound, bound)
        b = jax.random.uniform(kb, (1, fan_out), dtype, -bound, bound)
        return w, b

    gamma = jnp.ones((1, input_size), dtype)   # LayerNorm weight default
    beta = jnp.zeros((1, input_size), dtype)   # LayerNorm bias default
    w1, b1 = linear_init(ks[0], ks[1], input_size, hidden_size)
    w2, b2 = linear_init(ks[2], ks[3], hidden_size, hidden_size)
    w3, b3 = linear_init(ks[4], ks[5], hidden_size, output_size)
    params = (gamma, beta, w1, b1, w2, b2, w3, b3)
    # nn.LayerNorm(input_size, input_size): the second positional arg is eps!
    eps = float(input_size)
    return params, eps


def mlp_reference_np(x, params, eps):
    """Pure numpy (f64) reference for correctness checks."""
    gamma, beta, w1, b1, w2, b2, w3, b3 = [np.asarray(p, np.float64)
                                           for p in params]
    x = np.asarray(x, np.float64)
    mean = x.mean(-1, keepdims=True)
    var = ((x - mean) ** 2).mean(-1, keepdims=True)
    xn = (x - mean) / np.sqrt(var + eps) * gamma + beta
    h1 = xn @ w1 + b1
    h2 = h1 @ w2 + b2
    return (h2 @ w3 + b3).astype(np.float32)


# ----------------------------------------------------------------------------
# Demo / self-test
# ----------------------------------------------------------------------------
if __name__ == "__main__":
    key = jax.random.PRNGKey(0)
    k_x, k_p = jax.random.split(key)

    # Ragged batch (300) exercises the new block_m/grid-step selection;
    # output_size=64 exercises the lane-dense padding to 128.
    batch, input_size, hidden_size, output_size = 300, 128, 128, 64
    x = jax.random.normal(k_x, (batch, input_size), jnp.float32)
    params, eps = init_params(k_p, input_size, hidden_size, output_size)

    ref = mlp_reference_np(np.asarray(x), [np.asarray(p) for p in params], eps)

    # Decide (once, eagerly, outside any jit trace) whether single-buffered
    # grid-invariant weights are supported on this JAX build.
    _single_buffer_weights_supported()

    # f32 strict path (operands stay f32, f32 accumulation).
    fwd = jax.jit(functools.partial(mlp_forward, eps=eps))
    out = jax.block_until_ready(fwd(x, params))
    assert out.shape == (batch, output_size)
    err = float(np.max(np.abs(np.asarray(out) - ref)))
    assert err < 2e-3, f"f32 max err {err}"

    # Fast path: bf16 MXU operands with f32 accumulation (precision flag).
    fwd_fast = jax.jit(functools.partial(mlp_forward, eps=eps,
                                         mxu_dtype=jnp.bfloat16))
    out_fast = jax.block_until_ready(fwd_fast(x, params))
    err_fast = float(np.max(np.abs(np.asarray(out_fast) - ref)))
    assert np.isfinite(err_fast) and err_fast < 1e-2, f"bf16-MXU max err {err_fast}"

    # Fully bf16 inputs/weights (MXU-native operands).
    x_bf = x.astype(jnp.bfloat16)
    params_bf = tuple(p.astype(jnp.bfloat16) for p in params)
    out_bf = jax.block_until_ready(fwd(x_bf, params_bf))
    err_bf = float(np.max(np.abs(np.asarray(out_bf, np.float32) - ref)))
    assert np.isfinite(err_bf) and err_bf < 5e-2, f"bf16 max err {err_bf}"

    print("KERNEL_OK")
</pallas_src>

<mosaic_0001>
module attributes {stable_mosaic.version = 11 : i64} {
  func.func @_probe(%arg0: i32, %arg1: memref<8x128xf32, #tpu.memory_space<vmem>>, %arg2: memref<8x128xf32, #tpu.memory_space<vmem>>) attributes {dimension_semantics = [#tpu.dimension_semantics<arbitrary>], iteration_bounds = array<i64: 2>, scalar_prefetch = 0 : i64, scratch_operands = 0 : i64, tpu.core_type = #tpu.core_type<tc>, window_params = [{pipeline_mode = #tpu.pipeline_mode<synchronous>, transform_indices = @transform_0, window_bounds = array<i64: 8, 128>}, {transform_indices = @transform_1, window_bounds = array<i64: 8, 128>}]} {
    %c0 = arith.constant 0 : index
    %c0_0 = arith.constant 0 : index
    %0 = vector.load %arg1[%c0, %c0_0] : memref<8x128xf32, #tpu.memory_space<vmem>>, vector<8x128xf32>
    %cst = arith.constant 1.000000e+00 : f32
    %1 = vector.broadcast %cst : f32 to vector<8x128xf32>
    %2 = arith.addf %0, %1 : vector<8x128xf32>
    %c0_1 = arith.constant 0 : index
    %c0_2 = arith.constant 0 : index
    %3 = vector.load %arg2[%c0_1, %c0_2] : memref<8x128xf32, #tpu.memory_space<vmem>>, vector<8x128xf32>
    tpu.vector_store %arg2[%c0_1, %c0_2], %2 {strides = array<i32>} : memref<8x128xf32, #tpu.memory_space<vmem>>, vector<8x128xf32>,
    return
  }
  func.func @transform_0(%arg0: i32) -> (i32, i32) {
    %c0_i32 = arith.constant 0 : i32
    %c0_i32_0 = arith.constant 0 : i32
    %c0_i32_1 = arith.constant 0 : i32
    return %c0_i32, %c0_i32_0 : i32, i32
  }
  func.func @transform_1(%arg0: i32) -> (i32, i32) {
    %c0_i32 = arith.constant 0 : i32
    %c0_i32_0 = arith.constant 0 : i32
    return %arg0, %c0_i32 : i32, i32
  }
}

module attributes {stable_mosaic.version = 11 : i64} {
  func.func @_mlp_kernel(%arg0: i32, %arg1: memref<80x128xf32, #tpu.memory_space<vmem>>, %arg2: memref<1x128xf32, #tpu.memory_space<vmem>>, %arg3: memref<1x128xf32, #tpu.memory_space<vmem>>, %arg4: memref<128x128xf32, #tpu.memory_space<vmem>>, %arg5: memref<1x128xf32, #tpu.memory_space<vmem>>, %arg6: memref<128x128xf32, #tpu.memory_space<vmem>>, %arg7: memref<1x128xf32, #tpu.memory_space<vmem>>, %arg8: memref<128x128xf32, #tpu.memory_space<vmem>>, %arg9: memref<1x128xf32, #tpu.memory_space<vmem>>, %arg10: memref<80x128xf32, #tpu.memory_space<vmem>>) attributes {dimension_semantics = [#tpu.dimension_semantics<parallel>], iteration_bounds = array<i64: 4>, scalar_prefetch = 0 : i64, scratch_operands = 0 : i64, tpu.core_type = #tpu.core_type<tc>, window_params = [{transform_indices = @transform_0, window_bounds = array<i64: 80, 128>}, {pipeline_mode = #tpu.pipeline_mode<synchronous>, transform_indices = @transform_1, window_bounds = array<i64: 1, 128>}, {pipeline_mode = #tpu.pipeline_mode<synchronous>, transform_indices = @transform_2, window_bounds = array<i64: 1, 128>}, {pipeline_mode = #tpu.pipeline_mode<synchronous>, transform_indices = @transform_3, window_bounds = array<i64: 128, 128>}, {pipeline_mode = #tpu.pipeline_mode<synchronous>, transform_indices = @transform_4, window_bounds = array<i64: 1, 128>}, {pipeline_mode = #tpu.pipeline_mode<synchronous>, transform_indices = @transform_5, window_bounds = array<i64: 128, 128>}, {pipeline_mode = #tpu.pipeline_mode<synchronous>, transform_indices = @transform_6, window_bounds = array<i64: 1, 128>}, {pipeline_mode = #tpu.pipeline_mode<synchronous>, transform_indices = @transform_7, window_bounds = array<i64: 128, 128>}, {pipeline_mode = #tpu.pipeline_mode<synchronous>, transform_indices = @transform_8, window_bounds = array<i64: 1, 128>}, {transform_indices = @transform_9, window_bounds = array<i64: 80, 128>}]} {
    %c0 = arith.constant 0 : index
    %c0_0 = arith.constant 0 : index
    %0 = vector.load %arg1[%c0, %c0_0] : memref<80x128xf32, #tpu.memory_space<vmem>>, vector<80x128xf32>
    %cst = arith.constant dense<0.000000e+00> : vector<80xf32>
    %1 = vector.multi_reduction <add>, %0, %cst [1] : vector<80x128xf32> to vector<80xf32>
    %2 = vector.shape_cast %1 : vector<80xf32> to vector<80x1xf32>
    %cst_1 = arith.constant 7.812500e-03 : f32
    %3 = vector.broadcast %cst_1 : f32 to vector<80x1xf32>
    %4 = arith.mulf %2, %3 : vector<80x1xf32>
    %5 = arith.mulf %0, %0 : vector<80x128xf32>
    %cst_2 = arith.constant dense<0.000000e+00> : vector<80xf32>
    %6 = vector.multi_reduction <add>, %5, %cst_2 [1] : vector<80x128xf32> to vector<80xf32>
    %7 = vector.shape_cast %6 : vector<80xf32> to vector<80x1xf32>
    %cst_3 = arith.constant 7.812500e-03 : f32
    %8 = vector.broadcast %cst_3 : f32 to vector<80x1xf32>
    %9 = arith.mulf %7, %8 : vector<80x1xf32>
    %10 = arith.mulf %4, %4 : vector<80x1xf32>
    %11 = arith.subf %9, %10 : vector<80x1xf32>
    %cst_4 = arith.constant 0.000000e+00 : f32
    %12 = vector.broadcast %cst_4 : f32 to vector<80x1xf32>
    %13 = arith.maximumf %11, %12 : vector<80x1xf32>
    %14 = vector.broadcast %4 : vector<80x1xf32> to vector<80x128xf32>
    %15 = arith.subf %0, %14 : vector<80x128xf32>
    %cst_5 = arith.constant 1.280000e+02 : f32
    %16 = vector.broadcast %cst_5 : f32 to vector<80x1xf32>
    %17 = arith.addf %13, %16 : vector<80x1xf32>
    %18 = math.rsqrt %17 : vector<80x1xf32>
    %19 = vector.broadcast %18 : vector<80x1xf32> to vector<80x128xf32>
    %20 = arith.mulf %15, %19 : vector<80x128xf32>
    %c0_6 = arith.constant 0 : index
    %c0_7 = arith.constant 0 : index
    %21 = vector.load %arg2[%c0_6, %c0_7] : memref<1x128xf32, #tpu.memory_space<vmem>>, vector<1x128xf32>
    %22 = vector.broadcast %21 : vector<1x128xf32> to vector<80x128xf32>
    %23 = arith.mulf %20, %22 : vector<80x128xf32>
    %c0_8 = arith.constant 0 : index
    %c0_9 = arith.constant 0 : index
    %24 = vector.load %arg3[%c0_8, %c0_9] : memref<1x128xf32, #tpu.memory_space<vmem>>, vector<1x128xf32>
    %25 = vector.broadcast %24 : vector<1x128xf32> to vector<80x128xf32>
    %26 = arith.addf %23, %25 : vector<80x128xf32>
    %c0_10 = arith.constant 0 : index
    %c0_11 = arith.constant 0 : index
    %27 = vector.load %arg4[%c0_10, %c0_11] : memref<128x128xf32, #tpu.memory_space<vmem>>, vector<128x128xf32>
    %cst_12 = arith.constant dense<0.000000e+00> : vector<80x128xf32>
    %28 = tpu.matmul %26, %27, %cst_12 {dimension_numbers = #tpu.dot_dimension_numbers<[1], [0], [0], [1], [0, 0, 1, 1], [], []>} : vector<80x128xf32>, vector<128x128xf32>, vector<80x128xf32> -> vector<80x128xf32>
    %c0_13 = arith.constant 0 : index
    %c0_14 = arith.constant 0 : index
    %29 = vector.load %arg5[%c0_13, %c0_14] : memref<1x128xf32, #tpu.memory_space<vmem>>, vector<1x128xf32>
    %30 = vector.broadcast %29 : vector<1x128xf32> to vector<80x128xf32>
    %31 = arith.addf %28, %30 : vector<80x128xf32>
    %c0_15 = arith.constant 0 : index
    %c0_16 = arith.constant 0 : index
    %32 = vector.load %arg6[%c0_15, %c0_16] : memref<128x128xf32, #tpu.memory_space<vmem>>, vector<128x128xf32>
    %cst_17 = arith.constant dense<0.000000e+00> : vector<80x128xf32>
    %33 = tpu.matmul %31, %32, %cst_17 {dimension_numbers = #tpu.dot_dimension_numbers<[1], [0], [0], [1], [0, 0, 1, 1], [], []>} : vector<80x128xf32>, vector<128x128xf32>, vector<80x128xf32> -> vector<80x128xf32>
    %c0_18 = arith.constant 0 : index
    %c0_19 = arith.constant 0 : index
    %34 = vector.load %arg7[%c0_18, %c0_19] : memref<1x128xf32, #tpu.memory_space<vmem>>, vector<1x128xf32>
    %35 = vector.broadcast %34 : vector<1x128xf32> to vector<80x128xf32>
    %36 = arith.addf %33, %35 : vector<80x128xf32>
    %c0_20 = arith.constant 0 : index
    %c0_21 = arith.constant 0 : index
    %37 = vector.load %arg8[%c0_20, %c0_21] : memref<128x128xf32, #tpu.memory_space<vmem>>, vector<128x128xf32>
    %cst_22 = arith.constant dense<0.000000e+00> : vector<80x128xf32>
    %38 = tpu.matmul %36, %37, %cst_22 {dimension_numbers = #tpu.dot_dimension_numbers<[1], [0], [0], [1], [0, 0, 1, 1], [], []>} : vector<80x128xf32>, vector<128x128xf32>, vector<80x128xf32> -> vector<80x128xf32>
    %c0_23 = arith.constant 0 : index
    %c0_24 = arith.constant 0 : index
    %39 = vector.load %arg9[%c0_23, %c0_24] : memref<1x128xf32, #tpu.memory_space<vmem>>, vector<1x128xf32>
    %40 = vector.broadcast %39 : vector<1x128xf32> to vector<80x128xf32>
    %41 = arith.addf %38, %40 : vector<80x128xf32>
    %c0_25 = arith.constant 0 : index
    %c0_26 = arith.constant 0 : index
    %42 = vector.load %arg10[%c0_25, %c0_26] : memref<80x128xf32, #tpu.memory_space<vmem>>, vector<80x128xf32>
    tpu.vector_store %arg10[%c0_25, %c0_26], %41 {strides = array<i32>} : memref<80x128xf32, #tpu.memory_space<vmem>>, vector<80x128xf32>,
    return
  }
  func.func @transform_0(%arg0: i32) -> (i32, i32) {
    %c0_i32 = arith.constant 0 : i32
    %c0_i32_0 = arith.constant 0 : i32
    return %arg0, %c0_i32 : i32, i32
  }
  func.func @transform_1(%arg0: i32) -> (i32, i32) {
    %c0_i32 = arith.constant 0 : i32
    %c0_i32_0 = arith.constant 0 : i32
    %c0_i32_1 = arith.constant 0 : i32
    return %c0_i32, %c0_i32_0 : i32, i32
  }
  func.func @transform_2(%arg0: i32) -> (i32, i32) {
    %c0_i32 = arith.constant 0 : i32
    %c0_i32_0 = arith.constant 0 : i32
    %c0_i32_1 = arith.constant 0 : i32
    return %c0_i32, %c0_i32_0 : i32, i32
  }
  func.func @transform_3(%arg0: i32) -> (i32, i32) {
    %c0_i32 = arith.constant 0 : i32
    %c0_i32_0 = arith.constant 0 : i32
    %c0_i32_1 = arith.constant 0 : i32
    return %c0_i32, %c0_i32_0 : i32, i32
  }
  func.func @transform_4(%arg0: i32) -> (i32, i32) {
    %c0_i32 = arith.constant 0 : i32
    %c0_i32_0 = arith.constant 0 : i32
    %c0_i32_1 = arith.constant 0 : i32
    return %c0_i32, %c0_i32_0 : i32, i32
  }
  func.func @transform_5(%arg0: i32) -> (i32, i32) {
    %c0_i32 = arith.constant 0 : i32
    %c0_i32_0 = arith.constant 0 : i32
    %c0_i32_1 = arith.constant 0 : i32
    return %c0_i32, %c0_i32_0 : i32, i32
  }
  func.func @transform_6(%arg0: i32) -> (i32, i32) {
    %c0_i32 = arith.constant 0 : i32
    %c0_i32_0 = arith.constant 0 : i32
    %c0_i32_1 = arith.constant 0 : i32
    return %c0_i32, %c0_i32_0 : i32, i32
  }
  func.func @transform_7(%arg0: i32) -> (i32, i32) {
    %c0_i32 = arith.constant 0 : i32
    %c0_i32_0 = arith.constant 0 : i32
    %c0_i32_1 = arith.constant 0 : i32
    return %c0_i32, %c0_i32_0 : i32, i32
  }
  func.func @transform_8(%arg0: i32) -> (i32, i32) {
    %c0_i32 = arith.constant 0 : i32
    %c0_i32_0 = arith.constant 0 : i32
    %c0_i32_1 = arith.constant 0 : i32
    return %c0_i32, %c0_i32_0 : i32, i32
  }
  func.func @transform_9(%arg0: i32) -> (i32, i32) {
    %c0_i32 = arith.constant 0 : i32
    %c0_i32_0 = arith.constant 0 : i32
    return %arg0, %c0_i32 : i32, i32
  }
}

</mosaic_0001>

<llo_original>
// kernel: tpu_custom_call.1
$region0: #{tpu_custom_call.1}
  #allocation0 [shape = 'u32[]', space=smem, size = 0x4, offset = 0x4, fixed_abs, tag = 'smem constant byte address 0x4 - core index']
  #allocation1 [shape = 'u32[144,128]{1,0:T(1,128)}', space=vmem, size = 0x12000, scoped, tag = 'internal scratch']
  %s0 = inlined_call_operand.hbm [shape: f32[8,128], index: 0, kind: input, shape index: {}]
  %s1 = inlined_call_operand.hbm [shape: f32[16,128], index: 1, kind: output, shape index: {}]
  %s2 = sld [smem:[#allocation0]]
  $region41: #{tpu_custom_call.1} parent=0
    _
  %s4 = ssub.s32 1, %s2
  %s5 = scalar_select 0, %s4, %s2
  $region1: #{tpu_custom_call.1} parent=0
    #allocation2 [shape = 'u8[4096]{0}', space=vmem, size = 0x1000, scoped, tag = 'input window, operand 0, single buffered']
    #allocation3 [shape = 's32[2]{0}', space=sflag, size = 0x8, scoped, tag = 'scoped memory for tpu_custom_call.1']
    #allocation4 [shape = 's32[2]{0}', space=sflag, size = 0x8, scoped, tag = 'scoped memory for tpu_custom_call.1']
    #allocation5 [shape = 'u8[8192]{0}', space=vmem, size = 0x2000, scoped, tag = 'output window, operand 0']
    %6 = vsyncpa [#allocation3], 0
    %7 = vsyncpa [#allocation4], 0
    %s8 = scalar_lea.sflag [#allocation4], 1
    %9 = vsyncpa %s8, 0
    loop: start=0, step=1, limit=4
    $region2: #{tpu_custom_call.1} parent=1 // loop_pre_header
      _
    $region3: #{tpu_custom_call.1} parent=1 // loop_header
      %s11 = sphi 0, %s15
      %p12 = scmp.ge.s32.totalorder %s11, 4
      %s19 = sphi 0, %s19
      %s21 = sphi 0, %s19
      %s22 = sphi 0, %s21
      %s36 = sphi 0, %s22
      %s42 = sphi 0, %s44
      %s45 = sphi 0, %s42
      %s46 = sphi 0, %s45
      %s62 = sphi 0, %s46
    $region4: #{tpu_custom_call.1} parent=1 // loop_header_branch
      %14 = sbr.rel (%p12) target = $region8
    $region5: #{tpu_custom_call.1} parent=1 // loop_body
      %s16 = ssub.s32 %s11, 1
      %s17 = ssub.s32 %s11, 2
      %s18 = sadd.s32 %s11, 1
      %s20 = sadd.s32 %s19, 1
      %p23 = scmp.eq.s32.totalorder %s11, 1
      %p24 = scmp.ne.s32.totalorder %s19, %s21
      %p25 = scmp.eq.s32.totalorder %s11, 0
      %p26 = por %p24, %p25
      %p27 = scmp.ne.s32.totalorder %s19, %s21
      %p28 = scmp.eq.s32.totalorder %s16, 1
      %p29 = por %p27, %p28
      %p30 = scmp.ne.s32.totalorder %s21, %s22
      %p31 = scmp.eq.s32.totalorder %s16, 0
      %p32 = por %p30, %p31
      %p33 = scmp.ne.s32.totalorder %s21, %s22
      %p34 = scmp.eq.s32.totalorder %s17, 1
      %p35 = por %p33, %p34
      %p37 = scmp.ne.s32.totalorder %s22, %s36
      %p38 = scmp.eq.s32.totalorder %s17, 0
      %p39 = por %p37, %p38
      %s40 = ssub.s32 %s11, %s18
      %p41 = scmp.eq.s32.totalorder %s40, 0
      %s43 = sadd.s32 %s42, 1
      %s44 = scalar_select %p41, %s42, %s43
      %p47 = pneg %p41
      %p48 = scmp.eq.s32.totalorder %s11, 1
      %p49 = por %p47, %p48
      %p50 = scmp.ne.s32.totalorder %s42, %s45
      %p51 = scmp.eq.s32.totalorder %s11, 0
      %p52 = por %p50, %p51
      %p53 = scmp.ne.s32.totalorder %s42, %s45
      %p54 = scmp.eq.s32.totalorder %s16, 1
      %p55 = por %p53, %p54
      %p56 = scmp.ne.s32.totalorder %s45, %s46
      %p57 = scmp.eq.s32.totalorder %s16, 0
      %p58 = por %p56, %p57
      %p59 = scmp.ne.s32.totalorder %s45, %s46
      %p60 = scmp.eq.s32.totalorder %s17, 1
      %p61 = por %p59, %p60
      %p63 = scmp.ne.s32.totalorder %s46, %s62
      %p64 = scmp.eq.s32.totalorder %s17, 0
      %p65 = por %p63, %p64
      %p66 = scmp.le.s32.totalorder 1, %s11
      %p67 = scmp.lt.s32.totalorder %s11, 3
      %p68 = pnand %p66, %p67
      %p69 = pneg %p68
      // Predicated region
      $region9: #{tpu_custom_call.1} parent=5 // pred_check
        _
      $region10: #{tpu_custom_call.1} parent=5 // pred_check_branch
        %71 = sbr.rel (%p68) target = $region12
      $region11: #{tpu_custom_call.1} parent=5 // pred_region
        %s72 = ssub.s32 %s11, 1
        // Predicated region
        $region13: #{tpu_custom_call.1} parent=11 // pred_check
          %p73 = pneg %p32
        $region14: #{tpu_custom_call.1} parent=11 // pred_check_branch
          %75 = sbr.rel (%p73) target = $region16
        $region15: #{tpu_custom_call.1} parent=11 // pred_region
          %s77 = ssub.s32 128, 128
          %78 = vsyncadd [#allocation3], %s77
          %s80 = sshll.u32 [#allocation2], 4
          %s81 = int_to_ptr.vmem [resolvable:$true] %s80
          %83 = dma.hbm_to_vmem [thread:$0]  %s0, 128, %s81, [#allocation3]
        $region16: #{tpu_custom_call.1} parent=11 // pred_fallthru
          _
      $region12: #{tpu_custom_call.1} parent=5 // pred_fallthru
        _
      %p84 = scmp.lt.s32.totalorder %s11, 2
      // Predicated region
      $region17: #{tpu_custom_call.1} parent=5 // pred_check
        %p85 = pneg %p84
      $region18: #{tpu_custom_call.1} parent=5 // pred_check_branch
        %87 = sbr.rel (%p85) target = $region20
      $region19: #{tpu_custom_call.1} parent=5 // pred_region
        _
      $region20: #{tpu_custom_call.1} parent=5 // pred_fallthru
        _
      %p88 = scmp.le.s32.totalorder 1, %s11
      %p89 = scmp.lt.s32.totalorder %s11, 3
      %p90 = pnand %p88, %p89
      %p91 = pneg %p90
      // Predicated region
      $region21: #{tpu_custom_call.1} parent=5 // pred_check
        _
      $region22: #{tpu_custom_call.1} parent=5 // pred_check_branch
        %93 = sbr.rel (%p90) target = $region24
      $region23: #{tpu_custom_call.1} parent=5 // pred_region
        %s94 = ssub.s32 %s11, 1
        // Predicated region
        $region25: #{tpu_custom_call.1} parent=23 // pred_check
          %p95 = pneg %p32
        $region26: #{tpu_custom_call.1} parent=23 // pred_check_branch
          %97 = sbr.rel (%p95) target = $region28
        $region27: #{tpu_custom_call.1} parent=23 // pred_region
          %98 = dma.done [#allocation3], 128
        $region28: #{tpu_custom_call.1} parent=23 // pred_fallthru
          _
        %p99 = pneg %p32
        %p100 = pneg %p29
        %p101 = pneg %p58
        %p102 = pneg %p55
        %s103 = sand.u32 %s45, 1
        %s104 = scalar_lea.sflag [#allocation4], %s103
        %s105 = sand.u32 %s45, 1
        %s106 = smul.addr %s105, 8
        %s107 = scalar_lea.vmem [#allocation5], %s106
        %v108 = vld [vmem:[#allocation2] sm:$0xff]
        %v109 = vadd.f32 %v108, 1.0
        %110 = vst [vmem:[%s107] sm:$0xff] %v109
        %s111 = sand.u32 %s45, 1
        %s112 = scalar_lea.sflag [#allocation4], %s111
        %s113 = sand.u32 %s45, 1
        %s114 = smul.addr %s113, 8
        %s115 = scalar_lea.vmem [#allocation5], %s114
        // Predicated region
        $region29: #{tpu_custom_call.1} parent=23 // pred_check
          %p116 = pneg %p55
        $region30: #{tpu_custom_call.1} parent=23 // pred_check_branch
          %118 = sbr.rel (%p116) target = $region32
        $region31: #{tpu_custom_call.1} parent=23 // pred_region
          %s120 = ssub.s32 128, 128
          %121 = vsyncadd %s112, %s120
          %s122 = smul.addr %s16, 128
          %s123 = scalar_lea.hbm %s1, %s122
          %s125 = sshll.u32 %s115, 4
          %s126 = int_to_ptr.vmem [resolvable:$true] %s125
          %128 = dma.vmem_to_hbm [thread:$0]  %s126, 128, %s123, %s112
        $region32: #{tpu_custom_call.1} parent=23 // pred_fallthru
          _
      $region24: #{tpu_custom_call.1} parent=5 // pred_fallthru
        _
      %p129 = scmp.le.s32.totalorder 2, %s11
      // Predicated region
      $region33: #{tpu_custom_call.1} parent=5 // pred_check
        %p130 = pneg %p129
      $region34: #{tpu_custom_call.1} parent=5 // pred_check_branch
        %132 = sbr.rel (%p130) target = $region36
      $region35: #{tpu_custom_call.1} parent=5 // pred_region
        %s133 = ssub.s32 %s11, 2
        // Predicated region
        $region37: #{tpu_custom_call.1} parent=35 // pred_check
          %p134 = pneg %p61
        $region38: #{tpu_custom_call.1} parent=35 // pred_check_branch
          %136 = sbr.rel (%p134) target = $region40
        $region39: #{tpu_custom_call.1} parent=35 // pred_region
          %s137 = sand.u32 %s46, 1
          %s138 = scalar_lea.sflag [#allocation4], %s137
          %s139 = sand.u32 %s46, 1
          %s140 = smul.addr %s139, 8
          %s141 = scalar_lea.vmem [#allocation5], %s140
          %142 = dma.done %s138, 128
        $region40: #{tpu_custom_call.1} parent=35 // pred_fallthru
          _
      $region36: #{tpu_custom_call.1} parent=5 // pred_fallthru
        _
    $region6: #{tpu_custom_call.1} parent=1 // loop_footer
      %s15 = sadd.s32 1, %s11
    $region7: #{tpu_custom_call.1} parent=1 // loop_footer_branch
      %10 = sbr.rel target = $region3
    $region8: #{tpu_custom_call.1} parent=1 // loop_exit
      _
    %143 = vsyncpa [#allocation3], 1
    %s144 = scalar_lea.sflag [#allocation3], 1
    %145 = vsyncpa %s144, 1
    %146 = vsyncpa [#allocation4], 1
    %s147 = scalar_lea.sflag [#allocation4], 1
    %148 = vsyncpa %s147, 1

// kernel: mlp_forward.1
$region0: #{mlp_forward.1}
  #allocation0 [shape = 'u32[]', space=smem, size = 0x4, offset = 0x4, fixed_abs, tag = 'smem constant byte address 0x4 - core index']
  #allocation1 [shape = 'u32[144,128]{1,0:T(1,128)}', space=vmem, size = 0x12000, scoped, tag = 'internal scratch']
  %s0 = inlined_call_operand.vmem [shape: f32[320,128], index: 0, kind: input, shape index: {}]
  %s1 = inlined_call_operand.vmem [shape: f32[1,128], index: 1, kind: input, shape index: {}]
  %s2 = inlined_call_operand.vmem [shape: f32[1,128], index: 2, kind: input, shape index: {}]
  %s3 = inlined_call_operand.vmem [shape: f32[128,128], index: 3, kind: input, shape index: {}]
  %s4 = inlined_call_operand.vmem [shape: f32[1,128], index: 4, kind: input, shape index: {}]
  %s5 = inlined_call_operand.vmem [shape: f32[128,128], index: 5, kind: input, shape index: {}]
  %s6 = inlined_call_operand.vmem [shape: f32[1,128], index: 6, kind: input, shape index: {}]
  %s7 = inlined_call_operand.vmem [shape: f32[128,128], index: 7, kind: input, shape index: {}]
  %s8 = inlined_call_operand.vmem [shape: f32[1,128], index: 8, kind: input, shape index: {}]
  %s9 = inlined_call_operand.vmem [shape: f32[320,128], index: 9, kind: output, shape index: {}]
  %s10 = sld [smem:[#allocation0]]
  $region69: #{mlp_forward.1} parent=0
    _
  %s12 = ssub.s32 1, %s10
  %s13 = scalar_select 0, %s12, %s10
  loop: start=0, step=1, limit=6
  $region2: #{mlp_forward.1} parent=0 // loop_pre_header
    _
  $region3: #{mlp_forward.1} parent=0 // loop_header
    %s15 = sphi 0, %s19
    %p16 = scmp.ge.s32.totalorder %s15, 6
    %s25 = sphi 0, %s27
    %s28 = sphi 0, %s25
    %s29 = sphi 0, %s28
    %s45 = sphi 0, %s29
    %s49 = sphi 0, %s49
    %s51 = sphi 0, %s49
    %s52 = sphi 0, %s51
    %s66 = sphi 0, %s52
    %s70 = sphi 0, %s70
    %s72 = sphi 0, %s70
    %s73 = sphi 0, %s72
    %s87 = sphi 0, %s73
    %s91 = sphi 0, %s91
    %s93 = sphi 0, %s91
    %s94 = sphi 0, %s93
    %s108 = sphi 0, %s94
    %s112 = sphi 0, %s112
    %s114 = sphi 0, %s112
    %s115 = sphi 0, %s114
    %s129 = sphi 0, %s115
    %s133 = sphi 0, %s133
    %s135 = sphi 0, %s133
    %s136 = sphi 0, %s135
    %s150 = sphi 0, %s136
    %s154 = sphi 0, %s154
    %s156 = sphi 0, %s154
    %s157 = sphi 0, %s156
    %s171 = sphi 0, %s157
    %s175 = sphi 0, %s175
    %s177 = sphi 0, %s175
    %s178 = sphi 0, %s177
    %s192 = sphi 0, %s178
    %s196 = sphi 0, %s196
    %s198 = sphi 0, %s196
    %s199 = sphi 0, %s198
    %s213 = sphi 0, %s199
    %s219 = sphi 0, %s221
    %s222 = sphi 0, %s219
    %s223 = sphi 0, %s222
    %s239 = sphi 0, %s223
  $region4: #{mlp_forward.1} parent=0 // loop_header_branch
    %18 = sbr.rel (%p16) target = $region8
  $region5: #{mlp_forward.1} parent=0 // loop_body
    %s20 = ssub.s32 %s15, 1
    %s21 = ssub.s32 %s15, 2
    %s22 = sadd.s32 %s15, 1
    %s23 = ssub.s32 %s15, %s22
    %p24 = scmp.eq.s32.totalorder %s23, 0
    %s26 = sadd.s32 %s25, 1
    %s27 = scalar_select %p24, %s25, %s26
    %p30 = pneg %p24
    %p31 = scmp.eq.s32.totalorder %s15, 3
    %p32 = por %p30, %p31
    %p33 = scmp.ne.s32.totalorder %s25, %s28
    %p34 = scmp.eq.s32.totalorder %s15, 0
    %p35 = por %p33, %p34
    %p36 = scmp.ne.s32.totalorder %s25, %s28
    %p37 = scmp.eq.s32.totalorder %s20, 3
    %p38 = por %p36, %p37
    %p39 = scmp.ne.s32.totalorder %s28, %s29
    %p40 = scmp.eq.s32.totalorder %s20, 0
    %p41 = por %p39, %p40
    %p42 = scmp.ne.s32.totalorder %s28, %s29
    %p43 = scmp.eq.s32.totalorder %s21, 3
    %p44 = por %p42, %p43
    %p46 = scmp.ne.s32.totalorder %s29, %s45
    %p47 = scmp.eq.s32.totalorder %s21, 0
    %p48 = por %p46, %p47
    %s50 = sadd.s32 %s49, 1
    %p53 = scmp.eq.s32.totalorder %s15, 3
    %p54 = scmp.ne.s32.totalorder %s49, %s51
    %p55 = scmp.eq.s32.totalorder %s15, 0
    %p56 = por %p54, %p55
    %p57 = scmp.ne.s32.totalorder %s49, %s51
    %p58 = scmp.eq.s32.totalorder %s20, 3
    %p59 = por %p57, %p58
    %p60 = scmp.ne.s32.totalorder %s51, %s52
    %p61 = scmp.eq.s32.totalorder %s20, 0
    %p62 = por %p60, %p61
    %p63 = scmp.ne.s32.totalorder %s51, %s52
    %p64 = scmp.eq.s32.totalorder %s21, 3
    %p65 = por %p63, %p64
    %p67 = scmp.ne.s32.totalorder %s52, %s66
    %p68 = scmp.eq.s32.totalorder %s21, 0
    %p69 = por %p67, %p68
    %s71 = sadd.s32 %s70, 1
    %p74 = scmp.eq.s32.totalorder %s15, 3
    %p75 = scmp.ne.s32.totalorder %s70, %s72
    %p76 = scmp.eq.s32.totalorder %s15, 0
    %p77 = por %p75, %p76
    %p78 = scmp.ne.s32.totalorder %s70, %s72
    %p79 = scmp.eq.s32.totalorder %s20, 3
    %p80 = por %p78, %p79
    %p81 = scmp.ne.s32.totalorder %s72, %s73
    %p82 = scmp.eq.s32.totalorder %s20, 0
    %p83 = por %p81, %p82
    %p84 = scmp.ne.s32.totalorder %s72, %s73
    %p85 = scmp.eq.s32.totalorder %s21, 3
    %p86 = por %p84, %p85
    %p88 = scmp.ne.s32.totalorder %s73, %s87
    %p89 = scmp.eq.s32.totalorder %s21, 0
    %p90 = por %p88, %p89
    %s92 = sadd.s32 %s91, 1
    %p95 = scmp.eq.s32.totalorder %s15, 3
    %p96 = scmp.ne.s32.totalorder %s91, %s93
    %p97 = scmp.eq.s32.totalorder %s15, 0
    %p98 = por %p96, %p97
    %p99 = scmp.ne.s32.totalorder %s91, %s93
    %p100 = scmp.eq.s32.totalorder %s20, 3
    %p101 = por %p99, %p100
    %p102 = scmp.ne.s32.totalorder %s93, %s94
    %p103 = scmp.eq.s32.totalorder %s20, 0
    %p104 = por %p102, %p103
    %p105 = scmp.ne.s32.totalorder %s93, %s94
    %p106 = scmp.eq.s32.totalorder %s21, 3
    %p107 = por %p105, %p106
    %p109 = scmp.ne.s32.totalorder %s94, %s108
    %p110 = scmp.eq.s32.totalorder %s21, 0
    %p111 = por %p109, %p110
    %s113 = sadd.s32 %s112, 1
    %p116 = scmp.eq.s32.totalorder %s15, 3
    %p117 = scmp.ne.s32.totalorder %s112, %s114
    %p118 = scmp.eq.s32.totalorder %s15, 0
    %p119 = por %p117, %p118
    %p120 = scmp.ne.s32.totalorder %s112, %s114
    %p121 = scmp.eq.s32.totalorder %s20, 3
    %p122 = por %p120, %p121
    %p123 = scmp.ne.s32.totalorder %s114, %s115
    %p124 = scmp.eq.s32.totalorder %s20, 0
    %p125 = por %p123, %p124
    %p126 = scmp.ne.s32.totalorder %s114, %s115
    %p127 = scmp.eq.s32.totalorder %s21, 3
    %p128 = por %p126, %p127
    %p130 = scmp.ne.s32.totalorder %s115, %s129
    %p131 = scmp.eq.s32.totalorder %s21, 0
    %p132 = por %p130, %p131
    %s134 = sadd.s32 %s133, 1
    %p137 = scmp.eq.s32.totalorder %s15, 3
    %p138 = scmp.ne.s32.totalorder %s133, %s135
    %p139 = scmp.eq.s32.totalorder %s15, 0
    %p140 = por %p138, %p139
    %p141 = scmp.ne.s32.totalorder %s133, %s135
    %p142 = scmp.eq.s32.totalorder %s20, 3
    %p143 = por %p141, %p142
    %p144 = scmp.ne.s32.totalorder %s135, %s136
    %p145 = scmp.eq.s32.totalorder %s20, 0
    %p146 = por %p144, %p145
    %p147 = scmp.ne.s32.totalorder %s135, %s136
    %p148 = scmp.eq.s32.totalorder %s21, 3
    %p149 = por %p147, %p148
    %p151 = scmp.ne.s32.totalorder %s136, %s150
    %p152 = scmp.eq.s32.totalorder %s21, 0
    %p153 = por %p151, %p152
    %s155 = sadd.s32 %s154, 1
    %p158 = scmp.eq.s32.totalorder %s15, 3
    %p159 = scmp.ne.s32.totalorder %s154, %s156
    %p160 = scmp.eq.s32.totalorder %s15, 0
    %p161 = por %p159, %p160
    %p162 = scmp.ne.s32.totalorder %s154, %s156
    %p163 = scmp.eq.s32.totalorder %s20, 3
    %p164 = por %p162, %p163
    %p165 = scmp.ne.s32.totalorder %s156, %s157
    %p166 = scmp.eq.s32.totalorder %s20, 0
    %p167 = por %p165, %p166
    %p168 = scmp.ne.s32.totalorder %s156, %s157
    %p169 = scmp.eq.s32.totalorder %s21, 3
    %p170 = por %p168, %p169
    %p172 = scmp.ne.s32.totalorder %s157, %s171
    %p173 = scmp.eq.s32.totalorder %s21, 0
    %p174 = por %p172, %p173
    %s176 = sadd.s32 %s175, 1
    %p179 = scmp.eq.s32.totalorder %s15, 3
    %p180 = scmp.ne.s32.totalorder %s175, %s177
    %p181 = scmp.eq.s32.totalorder %s15, 0
    %p182 = por %p180, %p181
    %p183 = scmp.ne.s32.totalorder %s175, %s177
    %p184 = scmp.eq.s32.totalorder %s20, 3
    %p185 = por %p183, %p184
    %p186 = scmp.ne.s32.totalorder %s177, %s178
    %p187 = scmp.eq.s32.totalorder %s20, 0
    %p188 = por %p186, %p187
    %p189 = scmp.ne.s32.totalorder %s177, %s178
    %p190 = scmp.eq.s32.totalorder %s21, 3
    %p191 = por %p189, %p190
    %p193 = scmp.ne.s32.totalorder %s178, %s192
    %p194 = scmp.eq.s32.totalorder %s21, 0
    %p195 = por %p193, %p194
    %s197 = sadd.s32 %s196, 1
    %p200 = scmp.eq.s32.totalorder %s15, 3
    %p201 = scmp.ne.s32.totalorder %s196, %s198
    %p202 = scmp.eq.s32.totalorder %s15, 0
    %p203 = por %p201, %p202
    %p204 = scmp.ne.s32.totalorder %s196, %s198
    %p205 = scmp.eq.s32.totalorder %s20, 3
    %p206 = por %p204, %p205
    %p207 = scmp.ne.s32.totalorder %s198, %s199
    %p208 = scmp.eq.s32.totalorder %s20, 0
    %p209 = por %p207, %p208
    %p210 = scmp.ne.s32.totalorder %s198, %s199
    %p211 = scmp.eq.s32.totalorder %s21, 3
    %p212 = por %p210, %p211
    %p214 = scmp.ne.s32.totalorder %s199, %s213
    %p215 = scmp.eq.s32.totalorder %s21, 0
    %p216 = por %p214, %p215
    %s217 = ssub.s32 %s15, %s22
    %p218 = scmp.eq.s32.totalorder %s217, 0
    %s220 = sadd.s32 %s219, 1
    %s221 = scalar_select %p218, %s219, %s220
    %p224 = pneg %p218
    %p225 = scmp.eq.s32.totalorder %s15, 3
    %p226 = por %p224, %p225
    %p227 = scmp.ne.s32.totalorder %s219, %s222
    %p228 = scmp.eq.s32.totalorder %s15, 0
    %p229 = por %p227, %p228
    %p230 = scmp.ne.s32.totalorder %s219, %s222
    %p231 = scmp.eq.s32.totalorder %s20, 3
    %p232 = por %p230, %p231
    %p233 = scmp.ne.s32.totalorder %s222, %s223
    %p234 = scmp.eq.s32.totalorder %s20, 0
    %p235 = por %p233, %p234
    %p236 = scmp.ne.s32.totalorder %s222, %s223
    %p237 = scmp.eq.s32.totalorder %s21, 3
    %p238 = por %p236, %p237
    %p240 = scmp.ne.s32.totalorder %s223, %s239
    %p241 = scmp.eq.s32.totalorder %s21, 0
    %p242 = por %p240, %p241
    %p243 = scmp.le.s32.totalorder 1, %s15
    %p244 = scmp.lt.s32.totalorder %s15, 5
    %p245 = pnand %p243, %p244
    %p246 = pneg %p245
    // Predicated region
    $region9: #{mlp_forward.1} parent=5 // pred_check
      _
    $region10: #{mlp_forward.1} parent=5 // pred_check_branch
      %248 = sbr.rel (%p245) target = $region12
    $region11: #{mlp_forward.1} parent=5 // pred_region
      %s249 = ssub.s32 %s15, 1
      // Predicated region
      $region13: #{mlp_forward.1} parent=11 // pred_check
        %p250 = pneg %p62
      $region14: #{mlp_forward.1} parent=11 // pred_check_branch
        %252 = sbr.rel (%p250) target = $region16
      $region15: #{mlp_forward.1} parent=11 // pred_region
        _
      $region16: #{mlp_forward.1} parent=11 // pred_fallthru
        _
      // Predicated region
      $region17: #{mlp_forward.1} parent=11 // pred_check
        %p253 = pneg %p83
      $region18: #{mlp_forward.1} parent=11 // pred_check_branch
        %255 = sbr.rel (%p253) target = $region20
      $region19: #{mlp_forward.1} parent=11 // pred_region
        _
      $region20: #{mlp_forward.1} parent=11 // pred_fallthru
        _
      // Predicated region
      $region21: #{mlp_forward.1} parent=11 // pred_check
        %p256 = pneg %p104
      $region22: #{mlp_forward.1} parent=11 // pred_check_branch
        %258 = sbr.rel (%p256) target = $region24
      $region23: #{mlp_forward.1} parent=11 // pred_region
        _
      $region24: #{mlp_forward.1} parent=11 // pred_fallthru
        _
      // Predicated region
      $region25: #{mlp_forward.1} parent=11 // pred_check
        %p259 = pneg %p125
      $region26: #{mlp_forward.1} parent=11 // pred_check_branch
        %261 = sbr.rel (%p259) target = $region28
      $region27: #{mlp_forward.1} parent=11 // pred_region
        _
      $region28: #{mlp_forward.1} parent=11 // pred_fallthru
        _
      // Predicated region
      $region29: #{mlp_forward.1} parent=11 // pred_check
        %p262 = pneg %p146
      $region30: #{mlp_forward.1} parent=11 // pred_check_branch
        %264 = sbr.rel (%p262) target = $region32
      $region31: #{mlp_forward.1} parent=11 // pred_region
        _
      $region32: #{mlp_forward.1} parent=11 // pred_fallthru
        _
      // Predicated region
      $region33: #{mlp_forward.1} parent=11 // pred_check
        %p265 = pneg %p167
      $region34: #{mlp_forward.1} parent=11 // pred_check_branch
        %267 = sbr.rel (%p265) target = $region36
      $region35: #{mlp_forward.1} parent=11 // pred_region
        _
      $region36: #{mlp_forward.1} parent=11 // pred_fallthru
        _
      // Predicated region
      $region37: #{mlp_forward.1} parent=11 // pred_check
        %p268 = pneg %p188
      $region38: #{mlp_forward.1} parent=11 // pred_check_branch
        %270 = sbr.rel (%p268) target = $region40
      $region39: #{mlp_forward.1} parent=11 // pred_region
        _
      $region40: #{mlp_forward.1} parent=11 // pred_fallthru
        _
      // Predicated region
      $region41: #{mlp_forward.1} parent=11 // pred_check
        %p271 = pneg %p209
      $region42: #{mlp_forward.1} parent=11 // pred_check_branch
        %273 = sbr.rel (%p271) target = $region44
      $region43: #{mlp_forward.1} parent=11 // pred_region
        _
      $region44: #{mlp_forward.1} parent=11 // pred_fallthru
        _
    $region12: #{mlp_forward.1} parent=5 // pred_fallthru
      _
    %p274 = scmp.lt.s32.totalorder %s15, 4
    // Predicated region
    $region45: #{mlp_forward.1} parent=5 // pred_check
      %p275 = pneg %p274
    $region46: #{mlp_forward.1} parent=5 // pred_check_branch
      %277 = sbr.rel (%p275) target = $region48
    $region47: #{mlp_forward.1} parent=5 // pred_region
      // Predicated region
      $region49: #{mlp_forward.1} parent=47 // pred_check
        %p278 = pneg %p35
      $region50: #{mlp_forward.1} parent=47 // pred_check_branch
        %280 = sbr.rel (%p278) target = $region52
      $region51: #{mlp_forward.1} parent=47 // pred_region
        %s281 = smul.u32 10, %s15
        %p282 = scmp.lt.s32.totalorder %s281, 39
        %s283 = scalar_select %p282, %s281, 39
        %s284 = smul.addr %s283, 8
        %s285 = scalar_lea.vmem %s0, %s284
        %s286 = smul.u32 10, %s15
      $region52: #{mlp_forward.1} parent=47 // pred_fallthru
        _
    $region48: #{mlp_forward.1} parent=5 // pred_fallthru
      _
    %p287 = scmp.le.s32.totalorder 1, %s15
    %p288 = scmp.lt.s32.totalorder %s15, 5
    %p289 = pnand %p287, %p288
    %p290 = pneg %p289
    // Predicated region
    $region53: #{mlp_forward.1} parent=5 // pred_check
      _
    $region54: #{mlp_forward.1} parent=5 // pred_check_branch
      %292 = sbr.rel (%p289) target = $region56
    $region55: #{mlp_forward.1} parent=5 // pred_region
      %s293 = ssub.s32 %s15, 1
      %s294 = smul.u32 10, %s20
      %p295 = scmp.lt.s32.totalorder %s294, 39
      %s296 = scalar_select %p295, %s294, 39
      %s297 = smul.addr %s296, 8
      %s298 = scalar_lea.vmem %s0, %s297
      %p299 = pneg %p41
      %p300 = pneg %p38
      %p301 = pneg %p62
      %p302 = pneg %p59
      %p303 = pneg %p83
      %p304 = pneg %p80
      %p305 = pneg %p104
      %p306 = pneg %p101
      %p307 = pneg %p125
      %p308 = pneg %p122
      %p309 = pneg %p146
      %p310 = pneg %p143
      %p311 = pneg %p167
      %p312 = pneg %p164
      %p313 = pneg %p188
      %p314 = pneg %p185
      %p315 = pneg %p209
      %p316 = pneg %p206
      %p317 = pneg %p235
      %p318 = pneg %p232
      %s319 = smul.u32 10, %s20
      %p320 = scmp.lt.s32.totalorder %s319, 39
      %s321 = scalar_select %p320, %s319, 39
      %s322 = smul.addr %s321, 8
      %s323 = scalar_lea.vmem %s9, %s322
      %s324 = smul.u32 10, %s20
      %p325 = scmp.lt.s32.totalorder %s324, 39
      %s326 = scalar_select %p325, %s324, 39
      %s327 = smul.addr %s326, 8
      %s328 = scalar_lea.vmem %s0, %s327
      %s329 = smul.u32 10, %s20
      %s330 = smul.u32 10, %s20
      %p331 = scmp.lt.s32.totalorder %s330, 39
      %s332 = scalar_select %p331, %s330, 39
      %s333 = smul.addr %s332, 8
      %s334 = scalar_lea.vmem %s9, %s333
      %s335 = smul.u32 10, %s20
      %v336 = vld [vmem:[%s328] sm:$0xff]
      %v337 = vld [vmem:[%s328 + $0x8] sm:$0xff]
      %v338 = vld [vmem:[%s328 + $0x10] sm:$0xff]
      %v339 = vld [vmem:[%s328 + $0x18] sm:$0xff]
      %v340 = vld [vmem:[%s328 + $0x20] sm:$0xff]
      %v341 = vld [vmem:[%s328 + $0x28] sm:$0xff]
      %v342 = vld [vmem:[%s328 + $0x30] sm:$0xff]
      %v343 = vld [vmem:[%s328 + $0x38] sm:$0xff]
      %v344 = vld [vmem:[%s328 + $0x40] sm:$0xff]
      %v345 = vld [vmem:[%s328 + $0x48] sm:$0xff]
      %346 = vadd.xlane.f32.xlu0 %v336
      %v347 = vpop.xlane.xlu0 %346
      %348 = vadd.xlane.f32.xlu0 %v337
      %v349 = vpop.xlane.xlu0 %348
      %350 = vadd.xlane.f32.xlu0 %v338
      %v351 = vpop.xlane.xlu0 %350
      %352 = vadd.xlane.f32.xlu0 %v339
      %v353 = vpop.xlane.xlu0 %352
      %354 = vadd.xlane.f32.xlu0 %v340
      %v355 = vpop.xlane.xlu0 %354
      %356 = vadd.xlane.f32.xlu0 %v341
      %v357 = vpop.xlane.xlu0 %356
      %358 = vadd.xlane.f32.xlu0 %v342
      %v359 = vpop.xlane.xlu0 %358
      %360 = vadd.xlane.f32.xlu0 %v343
      %v361 = vpop.xlane.xlu0 %360
      %362 = vadd.xlane.f32.xlu0 %v344
      %v363 = vpop.xlane.xlu0 %362
      %364 = vadd.xlane.f32.xlu0 %v345
      %v365 = vpop.xlane.xlu0 %364
      %v366 = vmul.f32 %v347, 0.0078125
      %v367 = vmul.f32 %v349, 0.0078125
      %v368 = vmul.f32 %v351, 0.0078125
      %v369 = vmul.f32 %v353, 0.0078125
      %v370 = vmul.f32 %v355, 0.0078125
      %v371 = vmul.f32 %v357, 0.0078125
      %v372 = vmul.f32 %v359, 0.0078125
      %v373 = vmul.f32 %v361, 0.0078125
      %v374 = vmul.f32 %v363, 0.0078125
      %v375 = vmul.f32 %v365, 0.0078125
      %v376 = vmul.f32 %v336, %v336
      %v377 = vmul.f32 %v337, %v337
      %v378 = vmul.f32 %v338, %v338
      %v379 = vmul.f32 %v339, %v339
      %v380 = vmul.f32 %v340, %v340
      %v381 = vmul.f32 %v341, %v341
      %v382 = vmul.f32 %v342, %v342
      %v383 = vmul.f32 %v343, %v343
      %v384 = vmul.f32 %v344, %v344
      %v385 = vmul.f32 %v345, %v345
      %386 = vadd.xlane.f32.xlu0 %v376
      %v387 = vpop.xlane.xlu0 %386
      %388 = vadd.xlane.f32.xlu0 %v377
      %v389 = vpop.xlane.xlu0 %388
      %390 = vadd.xlane.f32.xlu0 %v378
      %v391 = vpop.xlane.xlu0 %390
      %392 = vadd.xlane.f32.xlu0 %v379
      %v393 = vpop.xlane.xlu0 %392
      %394 = vadd.xlane.f32.xlu0 %v380
      %v395 = vpop.xlane.xlu0 %394
      %396 = vadd.xlane.f32.xlu0 %v381
      %v397 = vpop.xlane.xlu0 %396
      %398 = vadd.xlane.f32.xlu0 %v382
      %v399 = vpop.xlane.xlu0 %398
      %400 = vadd.xlane.f32.xlu0 %v383
      %v401 = vpop.xlane.xlu0 %400
      %402 = vadd.xlane.f32.xlu0 %v384
      %v403 = vpop.xlane.xlu0 %402
      %404 = vadd.xlane.f32.xlu0 %v385
      %v405 = vpop.xlane.xlu0 %404
      %v406 = vmul.f32 %v387, 0.0078125
      %v407 = vmul.f32 %v389, 0.0078125
      %v408 = vmul.f32 %v391, 0.0078125
      %v409 = vmul.f32 %v393, 0.0078125
      %v410 = vmul.f32 %v395, 0.0078125
      %v411 = vmul.f32 %v397, 0.0078125
      %v412 = vmul.f32 %v399, 0.0078125
      %v413 = vmul.f32 %v401, 0.0078125
      %v414 = vmul.f32 %v403, 0.0078125
      %v415 = vmul.f32 %v405, 0.0078125
      %v416 = vmul.f32 %v366, %v366
      %v417 = vmul.f32 %v367, %v367
      %v418 = vmul.f32 %v368, %v368
      %v419 = vmul.f32 %v369, %v369
      %v420 = vmul.f32 %v370, %v370
      %v421 = vmul.f32 %v371, %v371
      %v422 = vmul.f32 %v372, %v372
      %v423 = vmul.f32 %v373, %v373
      %v424 = vmul.f32 %v374, %v374
      %v425 = vmul.f32 %v375, %v375
      %v426 = vsub.f32 %v406, %v416
      %v427 = vsub.f32 %v407, %v417
      %v428 = vsub.f32 %v408, %v418
      %v429 = vsub.f32 %v409, %v419
      %v430 = vsub.f32 %v410, %v420
      %v431 = vsub.f32 %v411, %v421
      %v432 = vsub.f32 %v412, %v422
      %v433 = vsub.f32 %v413, %v423
      %v434 = vsub.f32 %v414, %v424
      %v435 = vsub.f32 %v415, %v425
      %v436 = vmax.f32 %v426, 0.0
      %v437 = vmax.f32 %v427, 0.0
      %v438 = vmax.f32 %v428, 0.0
      %v439 = vmax.f32 %v429, 0.0
      %v440 = vmax.f32 %v430, 0.0
      %v441 = vmax.f32 %v431, 0.0
      %v442 = vmax.f32 %v432, 0.0
      %v443 = vmax.f32 %v433, 0.0
      %v444 = vmax.f32 %v434, 0.0
      %v445 = vmax.f32 %v435, 0.0
      %v446 = vsub.f32 %v336, %v366
      %v447 = vsub.f32 %v337, %v367
      %v448 = vsub.f32 %v338, %v368
      %v449 = vsub.f32 %v339, %v369
      %v450 = vsub.f32 %v340, %v370
      %v451 = vsub.f32 %v341, %v371
      %v452 = vsub.f32 %v342, %v372
      %v453 = vsub.f32 %v343, %v373
      %v454 = vsub.f32 %v344, %v374
      %v455 = vsub.f32 %v345, %v375
      %v456 = vadd.f32 %v436, 128.0
      %v457 = vadd.f32 %v437, 128.0
      %v458 = vadd.f32 %v438, 128.0
      %v459 = vadd.f32 %v439, 128.0
      %v460 = vadd.f32 %v440, 128.0
      %v461 = vadd.f32 %v441, 128.0
      %v462 = vadd.f32 %v442, 128.0
      %v463 = vadd.f32 %v443, 128.0
      %v464 = vadd.f32 %v444, 128.0
      %v465 = vadd.f32 %v445, 128.0
      %v466 = vrsqrt.pop %v456
      %v467 = vrsqrt.pop %v457
      %v468 = vrsqrt.pop %v458
      %v469 = vrsqrt.pop %v459
      %v470 = vrsqrt.pop %v460
      %v471 = vrsqrt.pop %v461
      %v472 = vrsqrt.pop %v462
      %v473 = vrsqrt.pop %v463
      %v474 = vrsqrt.pop %v464
      %v475 = vrsqrt.pop %v465
      %v476 = vmul.f32 %v446, %v466
      %v477 = vmul.f32 %v447, %v467
      %v478 = vmul.f32 %v448, %v468
      %v479 = vmul.f32 %v449, %v469
      %v480 = vmul.f32 %v450, %v470
      %v481 = vmul.f32 %v451, %v471
      %v482 = vmul.f32 %v452, %v472
      %v483 = vmul.f32 %v453, %v473
      %v484 = vmul.f32 %v454, %v474
      %v485 = vmul.f32 %v455, %v475
      %v486 = vld [vmem:[%s1] sm:$0x1]
      %v488 = vlaneseq
      %v489 = vshrl.u32 %v488, 7
      %v490 = vsub.s32 0, %v489
      %v491 = vrot.slane %v486, %v490
      %v493 = vmul.f32 %v476, %v491
      %v494 = vmul.f32 %v477, %v491
      %v495 = vmul.f32 %v478, %v491
      %v496 = vmul.f32 %v479, %v491
      %v497 = vmul.f32 %v480, %v491
      %v498 = vmul.f32 %v481, %v491
      %v499 = vmul.f32 %v482, %v491
      %v500 = vmul.f32 %v483, %v491
      %v501 = vmul.f32 %v484, %v491
      %v502 = vmul.f32 %v485, %v491
      %v503 = vld [vmem:[%s2] sm:$0x1]
      %v505 = vlaneseq
      %v506 = vshrl.u32 %v505, 7
      %v507 = vsub.s32 0, %v506
      %v508 = vrot.slane %v503, %v507
      %v510 = vadd.f32 %v493, %v508
      %v511 = vadd.f32 %v494, %v508
      %v512 = vadd.f32 %v495, %v508
      %v513 = vadd.f32 %v496, %v508
      %v514 = vadd.f32 %v497, %v508
      %v515 = vadd.f32 %v498, %v508
      %v516 = vadd.f32 %v499, %v508
      %v517 = vadd.f32 %v500, %v508
      %v518 = vadd.f32 %v501, %v508
      %v519 = vadd.f32 %v502, %v508
      %v520 = vld [vmem:[%s3] sm:$0xff]
      %v521 = vld [vmem:[%s3 + $0x8] sm:$0xff]
      %v522 = vld [vmem:[%s3 + $0x10] sm:$0xff]
      %v523 = vld [vmem:[%s3 + $0x18] sm:$0xff]
      %v524 = vld [vmem:[%s3 + $0x20] sm:$0xff]
      %v525 = vld [vmem:[%s3 + $0x28] sm:$0xff]
      %v526 = vld [vmem:[%s3 + $0x30] sm:$0xff]
      %v527 = vld [vmem:[%s3 + $0x38] sm:$0xff]
      %v528 = vld [vmem:[%s3 + $0x40] sm:$0xff]
      %v529 = vld [vmem:[%s3 + $0x48] sm:$0xff]
      %v530 = vld [vmem:[%s3 + $0x50] sm:$0xff]
      %v531 = vld [vmem:[%s3 + $0x58] sm:$0xff]
      %v532 = vld [vmem:[%s3 + $0x60] sm:$0xff]
      %v533 = vld [vmem:[%s3 + $0x68] sm:$0xff]
      %v534 = vld [vmem:[%s3 + $0x70] sm:$0xff]
      %v535 = vld [vmem:[%s3 + $0x78] sm:$0xff]
      %v536 = vld [vmem:[%s4] sm:$0x1]
      %v538 = vlaneseq
      %v539 = vshrl.u32 %v538, 7
      %v540 = vsub.s32 0, %v539
      %v541 = vrot.slane %v536, %v540
      %543 = vmatprep.subr.mxu0 0.0
      %544 = vmatpush1.msra.mxu0 %v535
      %545 = vmatprep.subr.mxu0 0.0
      %546 = vmatpush1.msra.mxu0 %v534
      %547 = vmatprep.subr.mxu0 0.0
      %548 = vmatpush1.msra.mxu0 %v533
      %549 = vmatprep.subr.mxu0 0.0
      %550 = vmatpush1.msra.mxu0 %v532
      %551 = vmatprep.subr.mxu0 0.0
      %552 = vmatpush1.msra.mxu0 %v531
      %553 = vmatprep.subr.mxu0 0.0
      %554 = vmatpush1.msra.mxu0 %v530
      %555 = vmatprep.subr.mxu0 0.0
      %556 = vmatpush1.msra.mxu0 %v529
      %557 = vmatprep.subr.mxu0 0.0
      %558 = vmatpush1.msra.mxu0 %v528
      %559 = vmatprep.subr.mxu0 0.0
      %560 = vmatpush1.msra.mxu0 %v527
      %561 = vmatprep.subr.mxu0 0.0
      %562 = vmatpush1.msra.mxu0 %v526
      %563 = vmatprep.subr.mxu0 0.0
      %564 = vmatpush1.msra.mxu0 %v525
      %565 = vmatprep.subr.mxu0 0.0
      %566 = vmatpush1.msra.mxu0 %v524
      %567 = vmatprep.subr.mxu0 0.0
      %568 = vmatpush1.msra.mxu0 %v523
      %569 = vmatprep.subr.mxu0 0.0
      %570 = vmatpush1.msra.mxu0 %v522
      %571 = vmatprep.subr.mxu0 0.0
      %572 = vmatpush1.msra.mxu0 %v521
      %573 = vmatprep.subr.mxu0 0.0
      %574 = vmatpush1.msra.mxu0 %v520
      %575 = vmatprep.subr.mxu0 0.0
      %576 = vmatpush2.msra.mxu0 0.0
      %577 = vmatprep.subr.mxu0 0.0
      %578 = vmatpush2.msra.mxu0 0.0
      %579 = vmatprep.subr.mxu0 0.0
      %580 = vmatpush2.msra.mxu0 0.0
      %581 = vmatprep.subr.mxu0 0.0
      %582 = vmatpush2.msra.mxu0 0.0
      %583 = vmatprep.subr.mxu0 0.0
      %584 = vmatpush2.msra.mxu0 0.0
      %585 = vmatprep.subr.mxu0 0.0
      %586 = vmatpush2.msra.mxu0 0.0
      %587 = vmatprep.subr.mxu0 0.0
      %588 = vmatpush2.msra.mxu0 0.0
      %589 = vmatprep.subr.mxu0 0.0
      %590 = vmatpush2.msra.mxu0 0.0
      %591 = vmatprep.subr.mxu0 0.0
      %592 = vmatpush2.msra.mxu0 0.0
      %593 = vmatprep.subr.mxu0 0.0
      %594 = vmatpush2.msra.mxu0 0.0
      %595 = vmatprep.subr.mxu0 0.0
      %596 = vmatpush2.msra.mxu0 0.0
      %597 = vmatprep.subr.mxu0 0.0
      %598 = vmatpush2.msra.mxu0 0.0
      %599 = vmatprep.subr.mxu0 0.0
      %600 = vmatpush2.msra.mxu0 0.0
      %601 = vmatprep.subr.mxu0 0.0
      %602 = vmatpush2.msra.mxu0 0.0
      %603 = vmatprep.subr.mxu0 0.0
      %604 = vmatpush2.msra.mxu0 0.0
      %605 = vmatprep.subr.mxu0 0.0
      %606 = vmatpush2.msra.mxu0 0.0
      %607 = vmatprep.mubr.f32.mxu0 0.0
      %608 = vmatmul.mubr.f32.gmra.mxu0 %v510
      %v609 = vpop.f32.mrf.mxu0
      %v610 = vadd.f32 %v541, %v609
      %v611 = vpop.f32.mrf.mxu0
      %612 = vmatprep.mubr.f32.mxu0 0.0
      %613 = vmatmul.mubr.f32.gmra.mxu0 %v511
      %v614 = vpop.f32.mrf.mxu0
      %v615 = vadd.f32 %v541, %v614
      %v616 = vpop.f32.mrf.mxu0
      %617 = vmatprep.mubr.f32.mxu0 0.0
      %618 = vmatmul.mubr.f32.gmra.mxu0 %v512
      %v619 = vpop.f32.mrf.mxu0
      %v620 = vadd.f32 %v541, %v619
      %v621 = vpop.f32.mrf.mxu0
      %622 = vmatprep.mubr.f32.mxu0 0.0
      %623 = vmatmul.mubr.f32.gmra.mxu0 %v513
      %v624 = vpop.f32.mrf.mxu0
      %v625 = vadd.f32 %v541, %v624
      %v626 = vpop.f32.mrf.mxu0
      %627 = vmatprep.mubr.f32.mxu0 0.0
      %628 = vmatmul.mubr.f32.gmra.mxu0 %v514
      %v629 = vpop.f32.mrf.mxu0
      %v630 = vadd.f32 %v541, %v629
      %v631 = vpop.f32.mrf.mxu0
      %632 = vmatprep.mubr.f32.mxu0 0.0
      %633 = vmatmul.mubr.f32.gmra.mxu0 %v515
      %v634 = vpop.f32.mrf.mxu0
      %v635 = vadd.f32 %v541, %v634
      %v636 = vpop.f32.mrf.mxu0
      %637 = vmatprep.mubr.f32.mxu0 0.0
      %638 = vmatmul.mubr.f32.gmra.mxu0 %v516
      %v639 = vpop.f32.mrf.mxu0
      %v640 = vadd.f32 %v541, %v639
      %v641 = vpop.f32.mrf.mxu0
      %642 = vmatprep.mubr.f32.mxu0 0.0
      %643 = vmatmul.mubr.f32.gmra.mxu0 %v517
      %v644 = vpop.f32.mrf.mxu0
      %v645 = vadd.f32 %v541, %v644
      %v646 = vpop.f32.mrf.mxu0
      %647 = vmatprep.mubr.f32.mxu0 0.0
      %648 = vmatmul.mubr.f32.gmra.mxu0 %v518
      %v649 = vpop.f32.mrf.mxu0
      %v650 = vadd.f32 %v541, %v649
      %v651 = vpop.f32.mrf.mxu0
      %652 = vmatprep.mubr.f32.mxu0 0.0
      %653 = vmatmul.mubr.f32.gmra.mxu0 %v519
      %v654 = vpop.f32.mrf.mxu0
      %v655 = vadd.f32 %v541, %v654
      %v656 = vpop.f32.mrf.mxu0
      %657 = vdwg.mxu0
      %v658 = vld [vmem:[%s5] sm:$0xff]
      %v659 = vld [vmem:[%s5 + $0x8] sm:$0xff]
      %v660 = vld [vmem:[%s5 + $0x10] sm:$0xff]
      %v661 = vld [vmem:[%s5 + $0x18] sm:$0xff]
      %v662 = vld [vmem:[%s5 + $0x20] sm:$0xff]
      %v663 = vld [vmem:[%s5 + $0x28] sm:$0xff]
      %v664 = vld [vmem:[%s5 + $0x30] sm:$0xff]
      %v665 = vld [vmem:[%s5 + $0x38] sm:$0xff]
      %v666 = vld [vmem:[%s5 + $0x40] sm:$0xff]
      %v667 = vld [vmem:[%s5 + $0x48] sm:$0xff]
      %v668 = vld [vmem:[%s5 + $0x50] sm:$0xff]
      %v669 = vld [vmem:[%s5 + $0x58] sm:$0xff]
      %v670 = vld [vmem:[%s5 + $0x60] sm:$0xff]
      %v671 = vld [vmem:[%s5 + $0x68] sm:$0xff]
      %v672 = vld [vmem:[%s5 + $0x70] sm:$0xff]
      %v673 = vld [vmem:[%s5 + $0x78] sm:$0xff]
      %v674 = vld [vmem:[%s6] sm:$0x1]
      %v676 = vlaneseq
      %v677 = vshrl.u32 %v676, 7
      %v678 = vsub.s32 0, %v677
      %v679 = vrot.slane %v674, %v678
      %681 = vmatprep.subr.mxu0 0.0
      %682 = vmatpush1.msra.mxu0 %v673
      %683 = vmatprep.subr.mxu0 0.0
      %684 = vmatpush1.msra.mxu0 %v672
      %685 = vmatprep.subr.mxu0 0.0
      %686 = vmatpush1.msra.mxu0 %v671
      %687 = vmatprep.subr.mxu0 0.0
      %688 = vmatpush1.msra.mxu0 %v670
      %689 = vmatprep.subr.mxu0 0.0
      %690 = vmatpush1.msra.mxu0 %v669
      %691 = vmatprep.subr.mxu0 0.0
      %692 = vmatpush1.msra.mxu0 %v668
      %693 = vmatprep.subr.mxu0 0.0
      %694 = vmatpush1.msra.mxu0 %v667
      %695 = vmatprep.subr.mxu0 0.0
      %696 = vmatpush1.msra.mxu0 %v666
      %697 = vmatprep.subr.mxu0 0.0
      %698 = vmatpush1.msra.mxu0 %v665
      %699 = vmatprep.subr.mxu0 0.0
      %700 = vmatpush1.msra.mxu0 %v664
      %701 = vmatprep.subr.mxu0 0.0
      %702 = vmatpush1.msra.mxu0 %v663
      %703 = vmatprep.subr.mxu0 0.0
      %704 = vmatpush1.msra.mxu0 %v662
      %705 = vmatprep.subr.mxu0 0.0
      %706 = vmatpush1.msra.mxu0 %v661
      %707 = vmatprep.subr.mxu0 0.0
      %708 = vmatpush1.msra.mxu0 %v660
      %709 = vmatprep.subr.mxu0 0.0
      %710 = vmatpush1.msra.mxu0 %v659
      %711 = vmatprep.subr.mxu0 0.0
      %712 = vmatpush1.msra.mxu0 %v658
      %713 = vmatprep.subr.mxu0 0.0
      %714 = vmatpush2.msra.mxu0 0.0
      %715 = vmatprep.subr.mxu0 0.0
      %716 = vmatpush2.msra.mxu0 0.0
      %717 = vmatprep.subr.mxu0 0.0
      %718 = vmatpush2.msra.mxu0 0.0
      %719 = vmatprep.subr.mxu0 0.0
      %720 = vmatpush2.msra.mxu0 0.0
      %721 = vmatprep.subr.mxu0 0.0
      %722 = vmatpush2.msra.mxu0 0.0
      %723 = vmatprep.subr.mxu0 0.0
      %724 = vmatpush2.msra.mxu0 0.0
      %725 = vmatprep.subr.mxu0 0.0
      %726 = vmatpush2.msra.mxu0 0.0
      %727 = vmatprep.subr.mxu0 0.0
      %728 = vmatpush2.msra.mxu0 0.0
      %729 = vmatprep.subr.mxu0 0.0
      %730 = vmatpush2.msra.mxu0 0.0
      %731 = vmatprep.subr.mxu0 0.0
      %732 = vmatpush2.msra.mxu0 0.0
      %733 = vmatprep.subr.mxu0 0.0
      %734 = vmatpush2.msra.mxu0 0.0
      %735 = vmatprep.subr.mxu0 0.0
      %736 = vmatpush2.msra.mxu0 0.0
      %737 = vmatprep.subr.mxu0 0.0
      %738 = vmatpush2.msra.mxu0 0.0
      %739 = vmatprep.subr.mxu0 0.0
      %740 = vmatpush2.msra.mxu0 0.0
      %741 = vmatprep.subr.mxu0 0.0
      %742 = vmatpush2.msra.mxu0 0.0
      %743 = vmatprep.subr.mxu0 0.0
      %744 = vmatpush2.msra.mxu0 0.0
      %745 = vmatprep.mubr.f32.mxu0 0.0
      %746 = vmatmul.mubr.f32.gmra.mxu0 %v610
      %v747 = vpop.f32.mrf.mxu0
      %v748 = vadd.f32 %v679, %v747
      %v749 = vpop.f32.mrf.mxu0
      %750 = vmatprep.mubr.f32.mxu0 0.0
      %751 = vmatmul.mubr.f32.gmra.mxu0 %v615
      %v752 = vpop.f32.mrf.mxu0
      %v753 = vadd.f32 %v679, %v752
      %v754 = vpop.f32.mrf.mxu0
      %755 = vmatprep.mubr.f32.mxu0 0.0
      %756 = vmatmul.mubr.f32.gmra.mxu0 %v620
      %v757 = vpop.f32.mrf.mxu0
      %v758 = vadd.f32 %v679, %v757
      %v759 = vpop.f32.mrf.mxu0
      %760 = vmatprep.mubr.f32.mxu0 0.0
      %761 = vmatmul.mubr.f32.gmra.mxu0 %v625
      %v762 = vpop.f32.mrf.mxu0
      %v763 = vadd.f32 %v679, %v762
      %v764 = vpop.f32.mrf.mxu0
      %765 = vmatprep.mubr.f32.mxu0 0.0
      %766 = vmatmul.mubr.f32.gmra.mxu0 %v630
      %v767 = vpop.f32.mrf.mxu0
      %v768 = vadd.f32 %v679, %v767
      %v769 = vpop.f32.mrf.mxu0
      %770 = vmatprep.mubr.f32.mxu0 0.0
      %771 = vmatmul.mubr.f32.gmra.mxu0 %v635
      %v772 = vpop.f32.mrf.mxu0
      %v773 = vadd.f32 %v679, %v772
      %v774 = vpop.f32.mrf.mxu0
      %775 = vmatprep.mubr.f32.mxu0 0.0
      %776 = vmatmul.mubr.f32.gmra.mxu0 %v640
      %v777 = vpop.f32.mrf.mxu0
      %v778 = vadd.f32 %v679, %v777
      %v779 = vpop.f32.mrf.mxu0
      %780 = vmatprep.mubr.f32.mxu0 0.0
      %781 = vmatmul.mubr.f32.gmra.mxu0 %v645
      %v782 = vpop.f32.mrf.mxu0
      %v783 = vadd.f32 %v679, %v782
      %v784 = vpop.f32.mrf.mxu0
      %785 = vmatprep.mubr.f32.mxu0 0.0
      %786 = vmatmul.mubr.f32.gmra.mxu0 %v650
      %v787 = vpop.f32.mrf.mxu0
      %v788 = vadd.f32 %v679, %v787
      %v789 = vpop.f32.mrf.mxu0
      %790 = vmatprep.mubr.f32.mxu0 0.0
      %791 = vmatmul.mubr.f32.gmra.mxu0 %v655
      %v792 = vpop.f32.mrf.mxu0
      %v793 = vadd.f32 %v679, %v792
      %v794 = vpop.f32.mrf.mxu0
      %795 = vdwg.mxu0
      %v796 = vld [vmem:[%s7] sm:$0xff]
      %v797 = vld [vmem:[%s7 + $0x8] sm:$0xff]
      %v798 = vld [vmem:[%s7 + $0x10] sm:$0xff]
      %v799 = vld [vmem:[%s7 + $0x18] sm:$0xff]
      %v800 = vld [vmem:[%s7 + $0x20] sm:$0xff]
      %v801 = vld [vmem:[%s7 + $0x28] sm:$0xff]
      %v802 = vld [vmem:[%s7 + $0x30] sm:$0xff]
      %v803 = vld [vmem:[%s7 + $0x38] sm:$0xff]
      %v804 = vld [vmem:[%s7 + $0x40] sm:$0xff]
      %v805 = vld [vmem:[%s7 + $0x48] sm:$0xff]
      %v806 = vld [vmem:[%s7 + $0x50] sm:$0xff]
      %v807 = vld [vmem:[%s7 + $0x58] sm:$0xff]
      %v808 = vld [vmem:[%s7 + $0x60] sm:$0xff]
      %v809 = vld [vmem:[%s7 + $0x68] sm:$0xff]
      %v810 = vld [vmem:[%s7 + $0x70] sm:$0xff]
      %v811 = vld [vmem:[%s7 + $0x78] sm:$0xff]
      %v812 = vld [vmem:[%s8] sm:$0x1]
      %v814 = vlaneseq
      %v815 = vshrl.u32 %v814, 7
      %v816 = vsub.s32 0, %v815
      %v817 = vrot.slane %v812, %v816
      %819 = vmatprep.subr.mxu0 0.0
      %820 = vmatpush1.msra.mxu0 %v811
      %821 = vmatprep.subr.mxu0 0.0
      %822 = vmatpush1.msra.mxu0 %v810
      %823 = vmatprep.subr.mxu0 0.0
      %824 = vmatpush1.msra.mxu0 %v809
      %825 = vmatprep.subr.mxu0 0.0
      %826 = vmatpush1.msra.mxu0 %v808
      %827 = vmatprep.subr.mxu0 0.0
      %828 = vmatpush1.msra.mxu0 %v807
      %829 = vmatprep.subr.mxu0 0.0
      %830 = vmatpush1.msra.mxu0 %v806
      %831 = vmatprep.subr.mxu0 0.0
      %832 = vmatpush1.msra.mxu0 %v805
      %833 = vmatprep.subr.mxu0 0.0
      %834 = vmatpush1.msra.mxu0 %v804
      %835 = vmatprep.subr.mxu0 0.0
      %836 = vmatpush1.msra.mxu0 %v803
      %837 = vmatprep.subr.mxu0 0.0
      %838 = vmatpush1.msra.mxu0 %v802
      %839 = vmatprep.subr.mxu0 0.0
      %840 = vmatpush1.msra.mxu0 %v801
      %841 = vmatprep.subr.mxu0 0.0
      %842 = vmatpush1.msra.mxu0 %v800
      %843 = vmatprep.subr.mxu0 0.0
      %844 = vmatpush1.msra.mxu0 %v799
      %845 = vmatprep.subr.mxu0 0.0
      %846 = vmatpush1.msra.mxu0 %v798
      %847 = vmatprep.subr.mxu0 0.0
      %848 = vmatpush1.msra.mxu0 %v797
      %849 = vmatprep.subr.mxu0 0.0
      %850 = vmatpush1.msra.mxu0 %v796
      %851 = vmatprep.subr.mxu0 0.0
      %852 = vmatpush2.msra.mxu0 0.0
      %853 = vmatprep.subr.mxu0 0.0
      %854 = vmatpush2.msra.mxu0 0.0
      %855 = vmatprep.subr.mxu0 0.0
      %856 = vmatpush2.msra.mxu0 0.0
      %857 = vmatprep.subr.mxu0 0.0
      %858 = vmatpush2.msra.mxu0 0.0
      %859 = vmatprep.subr.mxu0 0.0
      %860 = vmatpush2.msra.mxu0 0.0
      %861 = vmatprep.subr.mxu0 0.0
      %862 = vmatpush2.msra.mxu0 0.0
      %863 = vmatprep.subr.mxu0 0.0
      %864 = vmatpush2.msra.mxu0 0.0
      %865 = vmatprep.subr.mxu0 0.0
      %866 = vmatpush2.msra.mxu0 0.0
      %867 = vmatprep.subr.mxu0 0.0
      %868 = vmatpush2.msra.mxu0 0.0
      %869 = vmatprep.subr.mxu0 0.0
      %870 = vmatpush2.msra.mxu0 0.0
      %871 = vmatprep.subr.mxu0 0.0
      %872 = vmatpush2.msra.mxu0 0.0
      %873 = vmatprep.subr.mxu0 0.0
      %874 = vmatpush2.msra.mxu0 0.0
      %875 = vmatprep.subr.mxu0 0.0
      %876 = vmatpush2.msra.mxu0 0.0
      %877 = vmatprep.subr.mxu0 0.0
      %878 = vmatpush2.msra.mxu0 0.0
      %879 = vmatprep.subr.mxu0 0.0
      %880 = vmatpush2.msra.mxu0 0.0
      %881 = vmatprep.subr.mxu0 0.0
      %882 = vmatpush2.msra.mxu0 0.0
      %883 = vmatprep.mubr.f32.mxu0 0.0
      %884 = vmatmul.mubr.f32.gmra.mxu0 %v748
      %v885 = vpop.f32.mrf.mxu0
      %v886 = vadd.f32 %v817, %v885
      %v887 = vpop.f32.mrf.mxu0
      %888 = vmatprep.mubr.f32.mxu0 0.0
      %889 = vmatmul.mubr.f32.gmra.mxu0 %v753
      %v890 = vpop.f32.mrf.mxu0
      %v891 = vadd.f32 %v817, %v890
      %v892 = vpop.f32.mrf.mxu0
      %893 = vmatprep.mubr.f32.mxu0 0.0
      %894 = vmatmul.mubr.f32.gmra.mxu0 %v758
      %v895 = vpop.f32.mrf.mxu0
      %v896 = vadd.f32 %v817, %v895
      %v897 = vpop.f32.mrf.mxu0
      %898 = vmatprep.mubr.f32.mxu0 0.0
      %899 = vmatmul.mubr.f32.gmra.mxu0 %v763
      %v900 = vpop.f32.mrf.mxu0
      %v901 = vadd.f32 %v817, %v900
      %v902 = vpop.f32.mrf.mxu0
      %903 = vmatprep.mubr.f32.mxu0 0.0
      %904 = vmatmul.mubr.f32.gmra.mxu0 %v768
      %v905 = vpop.f32.mrf.mxu0
      %v906 = vadd.f32 %v817, %v905
      %v907 = vpop.f32.mrf.mxu0
      %908 = vmatprep.mubr.f32.mxu0 0.0
      %909 = vmatmul.mubr.f32.gmra.mxu0 %v773
      %v910 = vpop.f32.mrf.mxu0
      %v911 = vadd.f32 %v817, %v910
      %v912 = vpop.f32.mrf.mxu0
      %913 = vmatprep.mubr.f32.mxu0 0.0
      %914 = vmatmul.mubr.f32.gmra.mxu0 %v778
      %v915 = vpop.f32.mrf.mxu0
      %v916 = vadd.f32 %v817, %v915
      %v917 = vpop.f32.mrf.mxu0
      %918 = vmatprep.mubr.f32.mxu0 0.0
      %919 = vmatmul.mubr.f32.gmra.mxu0 %v783
      %v920 = vpop.f32.mrf.mxu0
      %v921 = vadd.f32 %v817, %v920
      %v922 = vpop.f32.mrf.mxu0
      %923 = vmatprep.mubr.f32.mxu0 0.0
      %924 = vmatmul.mubr.f32.gmra.mxu0 %v788
      %v925 = vpop.f32.mrf.mxu0
      %v926 = vadd.f32 %v817, %v925
      %v927 = vpop.f32.mrf.mxu0
      %928 = vmatprep.mubr.f32.mxu0 0.0
      %929 = vmatmul.mubr.f32.gmra.mxu0 %v793
      %v930 = vpop.f32.mrf.mxu0
      %v931 = vadd.f32 %v817, %v930
      %v932 = vpop.f32.mrf.mxu0
      %933 = vdwg.mxu0
      %934 = vst [vmem:[%s334] sm:$0xff] %v886
      %935 = vst [vmem:[%s334 + $0x8] sm:$0xff] %v891
      %936 = vst [vmem:[%s334 + $0x10] sm:$0xff] %v896
      %937 = vst [vmem:[%s334 + $0x18] sm:$0xff] %v901
      %938 = vst [vmem:[%s334 + $0x20] sm:$0xff] %v906
      %939 = vst [vmem:[%s334 + $0x28] sm:$0xff] %v911
      %940 = vst [vmem:[%s334 + $0x30] sm:$0xff] %v916
      %941 = vst [vmem:[%s334 + $0x38] sm:$0xff] %v921
      %942 = vst [vmem:[%s334 + $0x40] sm:$0xff] %v926
      %943 = vst [vmem:[%s334 + $0x48] sm:$0xff] %v931
      %s944 = smul.u32 10, %s20
      %p945 = scmp.lt.s32.totalorder %s944, 39
      %s946 = scalar_select %p945, %s944, 39
      %s947 = smul.addr %s946, 8
      %s948 = scalar_lea.vmem %s9, %s947
      // Predicated region
      $region57: #{mlp_forward.1} parent=55 // pred_check
        %p949 = pneg %p232
      $region58: #{mlp_forward.1} parent=55 // pred_check_branch
        %951 = sbr.rel (%p949) target = $region60
      $region59: #{mlp_forward.1} parent=55 // pred_region
        %s952 = smul.u32 10, %s20
      $region60: #{mlp_forward.1} parent=55 // pred_fallthru
        _
    $region56: #{mlp_forward.1} parent=5 // pred_fallthru
      _
    %p953 = scmp.le.s32.totalorder 2, %s15
    // Predicated region
    $region61: #{mlp_forward.1} parent=5 // pred_check
      %p954 = pneg %p953
    $region62: #{mlp_forward.1} parent=5 // pred_check_branch
      %956 = sbr.rel (%p954) target = $region64
    $region63: #{mlp_forward.1} parent=5 // pred_region
      %s957 = ssub.s32 %s15, 2
      // Predicated region
      $region65: #{mlp_forward.1} parent=63 // pred_check
        %p958 = pneg %p238
      $region66: #{mlp_forward.1} parent=63 // pred_check_branch
        %960 = sbr.rel (%p958) target = $region68
      $region67: #{mlp_forward.1} parent=63 // pred_region
        %s961 = smul.u32 10, %s21
        %p962 = scmp.lt.s32.totalorder %s961, 39
        %s963 = scalar_select %p962, %s961, 39
        %s964 = smul.addr %s963, 8
        %s965 = scalar_lea.vmem %s9, %s964
      $region68: #{mlp_forward.1} parent=63 // pred_fallthru
        _
    $region64: #{mlp_forward.1} parent=5 // pred_fallthru
      _
  $region6: #{mlp_forward.1} parent=0 // loop_footer
    %s19 = sadd.s32 1, %s15
  $region7: #{mlp_forward.1} parent=0 // loop_footer_branch
    %14 = sbr.rel target = $region3
  $region8: #{mlp_forward.1} parent=0 // loop_exit
    _

</llo_original>
